<compile_context>
chip_gen: v5e
topology: v5e:2x2
jax: 0.10.0
libtpu: 0.0.40
codegen_flags: <defaults>
</compile_context>

<pallas_src>
import functools

import numpy as np
import jax
import jax.numpy as jnp
from jax import lax
from jax.experimental import pallas as pl
from jax.experimental.pallas import tpu as pltpu


def _round_up(x, m):
    return ((x + m - 1) // m) * m


def _resample2d_kernel(tb_ref, x_ref, flow_ref, o_ref, *, H, Hb, W, Wp, TN,
                       bilinear):
    # tb_ref:   SMEM (2*n_tiles,) int32 -- per-tile [p0 // Wp, p0 % Wp]
    # x_ref:    (1, CT*Hb, W)   source image block, native layout (W last)
    # flow_ref: (1, 2, TN)      (dx, dy) for this output-pixel tile
    # o_ref:    (1, CT, TN)     output tile
    t = pl.program_id(2)

    xv = x_ref[0]                                   # (CT*Hb, W), native dtype
    flow = flow_ref[0].astype(jnp.float32)          # (2, TN)
    dx = flow[0:1, :]                               # (1, TN)
    dy = flow[1:2, :]                               # (1, TN)

    # Exact base output-pixel coordinates.  The per-tile row/col of the first
    # pixel comes from SMEM (exact ints); the vectorized part only handles
    # values < Wp + TN, which are exactly representable in f32.
    wp_f = jnp.float32(Wp)
    q0 = tb_ref[2 * t].astype(jnp.float32)          # (p0 // Wp), exact
    r0 = tb_ref[2 * t + 1].astype(jnp.float32)      # (p0 %  Wp), exact

    i = lax.broadcasted_iota(jnp.int32, (1, TN), 1).astype(jnp.float32)
    s = r0 + i                                      # < Wp + TN  -> exact in f32
    by_off = jnp.floor(s / wp_f)
    bx = s - by_off * wp_f
    # fix possible 1-ulp division rounding (s, Wp are exact small integers)
    too_lo = bx < 0.0
    too_hi = bx >= wp_f
    by_off = jnp.where(too_lo, by_off - 1.0,
                       jnp.where(too_hi, by_off + 1.0, by_off))
    bx = jnp.where(too_lo, bx + wp_f, jnp.where(too_hi, bx - wp_f, bx))
    by = q0 + by_off

    xf = bx + dx                                    # sample x coordinate
    yf = by + dy                                    # sample y coordinate
    # NaN flow would make the float->int cast undefined; +/-inf handled by clip.
    xf = jnp.where(jnp.isnan(xf), jnp.float32(0.0), xf)
    yf = jnp.where(jnp.isnan(yf), jnp.float32(0.0), yf)

    h_iota = lax.broadcasted_iota(jnp.int32, (Hb, TN), 0)
    w_iota = lax.broadcasted_iota(jnp.int32, (W, TN), 0)
    zero = jnp.float32(0.0)

    if bilinear:
        x0 = jnp.floor(xf)
        y0 = jnp.floor(yf)
        alpha = xf - x0
        beta = yf - y0
        # border-clamped neighbor indices, unclamped fractions (matches CUDA fwd)
        xL = jnp.clip(x0, 0, W - 1).astype(jnp.int32)
        xR = jnp.clip(x0 + 1.0, 0, W - 1).astype(jnp.int32)
        yT = jnp.clip(y0, 0, H - 1).astype(jnp.int32)
        yB = jnp.clip(y0 + 1.0, 0, H - 1).astype(jnp.int32)
        # Separable one-hot blend weights (additive -> coinciding clamped
        # corners sum, same as the reference/CUDA behavior).  Padded H rows
        # (>= H) never match the clamped indices -> weight 0.
        a_mat = (jnp.where(h_iota == yT, 1.0 - beta, zero)
                 + jnp.where(h_iota == yB, beta, zero))          # (Hb, TN)
        b_mat = (jnp.where(w_iota == xL, 1.0 - alpha, zero)
                 + jnp.where(w_iota == xR, alpha, zero))         # (W, TN)
    else:
        # nearest: round half away from zero (matches CUDA round()), then clamp
        xN = jnp.clip(jnp.sign(xf) * jnp.floor(jnp.abs(xf) + 0.5),
                      0, W - 1).astype(jnp.int32)
        yN = jnp.clip(jnp.sign(yf) * jnp.floor(jnp.abs(yf) + 0.5),
                      0, H - 1).astype(jnp.int32)
        a_mat = jnp.where(h_iota == yN, jnp.float32(1.0), zero)  # (Hb, TN)
        b_mat = jnp.where(w_iota == xN, jnp.float32(1.0), zero)  # (W, TN)

    # Horizontal gather/blend on the MXU: (CT*Hb, W) @ (W, TN) -> (CT*Hb, TN).
    # bf16 inputs (including host-cast f32 when fast_math) take the bf16 path.
    if xv.dtype == jnp.bfloat16:
        lhs, rhs = xv, b_mat.astype(jnp.bfloat16)
    else:
        lhs, rhs = xv.astype(jnp.float32), b_mat
    v = jnp.dot(lhs, rhs, preferred_element_type=jnp.float32)    # (CT*Hb, TN)

    # Vertical per-pixel weighted reduction on the VPU/XLU.  Hb is a multiple
    # of 8, so the (CT, Hb, TN) re-view is free (no VMEM copy).
    ct = o_ref.shape[1]
    out = jnp.sum(v.reshape(ct, Hb, TN) * a_mat[None, :, :], axis=1)  # (CT, TN)
    o_ref[0] = out.astype(o_ref.dtype)


def resample2d(x, flow, sample_mode="bilinear", kernel_size=1, *,
               tile_pixels=None, fast_math=True):
    """Pallas TPU implementation of Resample2d.forward (== warp(input, flow)).

    x: (N, C, H, W); flow: (N, 2, H', W') or (N, H', W', 2).
    Returns (N, C, H', W') in x's dtype.  fast_math=True uses a bf16 MXU path
    for f32 inputs (blend weights ~bf16 precision).
    """
    assert kernel_size == 1, "kernel_size != 1 not supported"
    # TODO(synk): 'bicubic' sample_mode not implemented (only bilinear / nearest).
    assert sample_mode in ("bilinear", "nearest")

    # Same convention as the PyTorch wrapper: (N, H', W', 2) -> (N, 2, H', W').
    if flow.shape[-1] == 2:
        flow = jnp.transpose(flow, (0, 3, 1, 2))

    N, C, H, W = x.shape
    _, _, Hp, Wp = flow.shape
    HpWp = Hp * Wp

    out_dtype = x.dtype
    # bf16 MXU path: cast once on the host (halves x HBM/DMA bytes, avoids
    # re-casting the resident block on every pixel tile).
    if fast_math and x.dtype == jnp.float32:
        x = x.astype(jnp.bfloat16)

    # ---- generation-aware VMEM knobs ----
    try:
        vmem_cap = pltpu.get_tpu_info().vmem_capacity_bytes
    except Exception:
        vmem_cap = 64 * 1024 * 1024          # conservative fallback
    if vmem_cap >= 100 * 1024 * 1024:        # v5e / v6e class (128 MiB VMEM)
        vmem_limit = 96 * 1024 * 1024
        x_budget = 16 * 1024 * 1024
        v_budget = 16 * 1024 * 1024
        default_tile = 1024
    else:                                    # v7x class (64 MiB per TensorCore)
        vmem_limit = max(24 * 1024 * 1024,
                         min(int(vmem_cap * 0.6), 40 * 1024 * 1024))
        x_budget = 8 * 1024 * 1024
        v_budget = 8 * 1024 * 1024
        default_tile = 512

    # ---- output-pixel tiling: lane-dense tiles, multiple of 128 ----
    if tile_pixels is None:
        tile_pixels = default_tile
    TN = min(_round_up(HpWp, 128), _round_up(tile_pixels, 128))
    HpWp_pad = _round_up(HpWp, TN)
    n_tiles = HpWp_pad // TN

    # Pad H to a multiple of 8 so the (CT, Hb, TN) re-view of the matmul result
    # is free and CT*Hb always satisfies the 8-sublane block constraint.
    Hb = _round_up(H, 8)
    if Hb != H:
        x = jnp.pad(x, ((0, 0), (0, 0), (0, Hb - H), (0, 0)))

    x_itemsize = jnp.dtype(x.dtype).itemsize
    o_itemsize = jnp.dtype(out_dtype).itemsize

    # ---- channel tiling: resident x block + f32 intermediate must fit VMEM ----
    def fits(ct):
        x_bytes = 2 * ct * Hb * W * x_itemsize   # pipeline double-buffers x
        v_bytes = ct * Hb * TN * 4               # f32 matmul result
        o_bytes = 2 * ct * TN * o_itemsize       # double-buffered output tile
        return x_bytes <= x_budget and (v_bytes + o_bytes) <= v_budget

    CT, C_pad = C, C
    if not fits(C):
        CT = None
        # prefer the LARGEST divisor tile: fewer c-tiles -> less redundant
        # per-tile coordinate / one-hot reconstruction and fewer grid steps.
        for d in sorted((d for d in range(8, C) if C % d == 0 and d % 8 == 0),
                        reverse=True):
            if fits(d):
                CT = d
                break
        if CT is None:
            # No usable divisor of C: pad C and tile with a multiple-of-8 block.
            fitting = [d for d in range(8, _round_up(C, 8) + 1, 8) if fits(d)]
            if fitting:
                CT = min(fitting, key=lambda d: (_round_up(C, d), -d))
            else:
                CT = 8
            C_pad = _round_up(C, CT)
            if C_pad != C:
                x = jnp.pad(x, ((0, 0), (0, C_pad - C), (0, 0), (0, 0)))
    n_ctiles = C_pad // CT

    # Native layout: (N, C, Hb, W) -> (N, C*Hb, W).  Pure reshape, no transpose.
    x_flat = x.reshape(N, C_pad * Hb, W)

    # Flow stays in its native dtype (cast to f32 in-kernel).
    flow_flat = flow.reshape(N, 2, HpWp)
    if HpWp_pad != HpWp:
        flow_flat = jnp.pad(flow_flat, ((0, 0), (0, 0), (0, HpWp_pad - HpWp)))

    # Per-tile exact base coordinates [p0 // Wp, p0 % Wp] -> SMEM scalar
    # prefetch.  Keeps base coordinates exact for arbitrarily large outputs
    # without any in-kernel integer division.
    p0 = np.arange(n_tiles, dtype=np.int64) * TN
    tile_base = jnp.asarray(
        np.stack([p0 // Wp, p0 % Wp], axis=1).reshape(-1).astype(np.int32))

    kernel = functools.partial(
        _resample2d_kernel, H=H, Hb=Hb, W=W, Wp=Wp, TN=TN,
        bilinear=(sample_mode == "bilinear"))

    out_flat = pl.pallas_call(
        kernel,
        out_shape=jax.ShapeDtypeStruct((N, C_pad, HpWp_pad), out_dtype),
        grid_spec=pltpu.PrefetchScalarGridSpec(
            num_scalar_prefetch=1,
            # pixel-tile axis innermost -> the (CT*Hb, W) x block stays resident
            grid=(N, n_ctiles, n_tiles),
            in_specs=[
                pl.BlockSpec((1, CT * Hb, W), lambda n, c, t, tb: (n, c, 0)),
                pl.BlockSpec((1, 2, TN), lambda n, c, t, tb: (n, 0, t)),
            ],
            out_specs=pl.BlockSpec((1, CT, TN), lambda n, c, t, tb: (n, c, t)),
        ),
        compiler_params=pltpu.CompilerParams(
            # innermost axis "arbitrary" -> megacore shards on N / c-tiles
            dimension_semantics=("parallel", "parallel", "arbitrary"),
            vmem_limit_bytes=vmem_limit,
        ),
    )(tile_base, x_flat, flow_flat)

    return out_flat[:, :C, :HpWp].reshape(N, C, Hp, Wp)


def _reference_resample2d(x, flow):
    """Pure-JAX reference (bilinear, border-clamped indices)."""
    N, C, H, W = x.shape
    _, _, Hp, Wp = flow.shape
    iy, ix = jnp.meshgrid(jnp.arange(Hp, dtype=jnp.float32),
                          jnp.arange(Wp, dtype=jnp.float32), indexing="ij")
    xf = ix[None] + flow[:, 0]
    yf = iy[None] + flow[:, 1]
    x0 = jnp.floor(xf)
    y0 = jnp.floor(yf)
    a = xf - x0
    b = yf - y0
    xL = jnp.clip(x0, 0, W - 1).astype(jnp.int32)
    xR = jnp.clip(x0 + 1, 0, W - 1).astype(jnp.int32)
    yT = jnp.clip(y0, 0, H - 1).astype(jnp.int32)
    yB = jnp.clip(y0 + 1, 0, H - 1).astype(jnp.int32)

    def gather(yy, xx):
        return jax.vmap(lambda img, y_, x_: img[:, y_, x_])(x, yy, xx)  # (N,C,Hp,Wp)

    return (gather(yT, xL) * ((1 - a) * (1 - b))[:, None]
            + gather(yT, xR) * (a * (1 - b))[:, None]
            + gather(yB, xL) * ((1 - a) * b)[:, None]
            + gather(yB, xR) * (a * b)[:, None])


if __name__ == "__main__":
    key = jax.random.PRNGKey(0)
    kx, kf = jax.random.split(key)
    N, C, H, W = 2, 4, 16, 16
    x = jax.random.normal(kx, (N, C, H, W), dtype=jnp.float32)
    # flow in (N, 2, H', W'), displacements of a few pixels
    flow = 2.5 * jax.random.normal(kf, (N, 2, H, W), dtype=jnp.float32)

    ref = _reference_resample2d(x, flow)

    # exact (f32 MXU) path
    out = resample2d(x, flow, sample_mode="bilinear", kernel_size=1,
                     fast_math=False)
    out = jax.block_until_ready(out)
    assert out.shape == (N, C, H, W)
    err = float(jnp.max(jnp.abs(out - ref)))
    assert err < 1e-4, f"f32 path mismatch vs reference: {err}"

    # default fast (bf16 MXU) path -- blend precision ~bf16
    out_fast = resample2d(x, flow, sample_mode="bilinear", kernel_size=1)
    out_fast = jax.block_until_ready(out_fast)
    assert out_fast.shape == (N, C, H, W)
    err_fast = float(jnp.max(jnp.abs(out_fast - ref)))
    assert err_fast < 1e-1, f"bf16 path mismatch vs reference: {err_fast}"

    # smoke-test nearest mode and the (N, H', W', 2) flow layout path
    out_n = resample2d(x, jnp.transpose(flow, (0, 2, 3, 1)), sample_mode="nearest")
    out_n = jax.block_until_ready(out_n)
    assert out_n.shape == (N, C, H, W)

    print("KERNEL_OK")
</pallas_src>

<mosaic_0001>
module attributes {stable_mosaic.version = 11 : i64} {
  func.func @_resample2d_kernel(%arg0: i32, %arg1: i32, %arg2: i32, %arg3: memref<2xi32, #tpu.memory_space<smem>>, %arg4: memref<1x64x16xf32, #tpu.memory_space<vmem>>, %arg5: memref<1x2x256xf32, #tpu.memory_space<vmem>>, %arg6: memref<1x4x256xf32, #tpu.memory_space<vmem>>) attributes {dimension_semantics = [#tpu.dimension_semantics<parallel>, #tpu.dimension_semantics<parallel>, #tpu.dimension_semantics<arbitrary>], iteration_bounds = array<i64: 2, 1, 1>, scalar_prefetch = 1 : i64, scratch_operands = 0 : i64, tpu.core_type = #tpu.core_type<tc>, window_params = [{transform_indices = @transform_0, window_bounds = array<i64: 1, 64, 16>}, {transform_indices = @transform_1, window_bounds = array<i64: 1, 2, 256>}, {transform_indices = @transform_2, window_bounds = array<i64: 1, 4, 256>}]} {
    %c0 = arith.constant 0 : index
    %c0_0 = arith.constant 0 : index
    %c0_1 = arith.constant 0 : index
    %0 = vector.load %arg4[%c0, %c0_0, %c0_1] : memref<1x64x16xf32, #tpu.memory_space<vmem>>, vector<1x64x16xf32>
    %1 = vector.shape_cast %0 : vector<1x64x16xf32> to vector<64x16xf32>
    %c0_2 = arith.constant 0 : index
    %c0_3 = arith.constant 0 : index
    %c0_4 = arith.constant 0 : index
    %2 = vector.load %arg5[%c0_2, %c0_3, %c0_4] : memref<1x2x256xf32, #tpu.memory_space<vmem>>, vector<1x2x256xf32>
    %3 = vector.shape_cast %2 : vector<1x2x256xf32> to vector<2x256xf32>
    %4 = vector.extract_strided_slice %3 {offsets = [0, 0], sizes = [1, 256], strides = [1, 1]} : vector<2x256xf32> to vector<1x256xf32>
    %5 = vector.extract_strided_slice %3 {offsets = [1, 0], sizes = [1, 256], strides = [1, 1]} : vector<2x256xf32> to vector<1x256xf32>
    %c2_i32 = arith.constant 2 : i32
    %6 = arith.muli %c2_i32, %arg2 : i32
    %7 = arith.index_cast %6 : i32 to index
    %8 = memref.load %arg3[%7] : memref<2xi32, #tpu.memory_space<smem>>
    %9 = arith.sitofp %8 : i32 to f32
    %c2_i32_5 = arith.constant 2 : i32
    %10 = arith.muli %c2_i32_5, %arg2 : i32
    %c1_i32 = arith.constant 1 : i32
    %11 = arith.addi %10, %c1_i32 : i32
    %12 = arith.index_cast %11 : i32 to index
    %13 = memref.load %arg3[%12] : memref<2xi32, #tpu.memory_space<smem>>
    %14 = arith.sitofp %13 : i32 to f32
    %15 = tpu.iota {dimensions = array<i32: 1>} : vector<1x256xi32>
    %16 = arith.sitofp %15 : vector<1x256xi32> to vector<1x256xf32>
    %17 = vector.broadcast %14 : f32 to vector<1x256xf32>
    %18 = arith.addf %17, %16 : vector<1x256xf32>
    %cst = arith.constant 1.600000e+01 : f32
    %19 = vector.broadcast %cst : f32 to vector<1x256xf32>
    %20 = arith.divf %18, %19 : vector<1x256xf32>
    %21 = math.floor %20 : vector<1x256xf32>
    %cst_6 = arith.constant 1.600000e+01 : f32
    %22 = vector.broadcast %cst_6 : f32 to vector<1x256xf32>
    %23 = arith.mulf %21, %22 : vector<1x256xf32>
    %24 = arith.subf %18, %23 : vector<1x256xf32>
    %cst_7 = arith.constant 0.000000e+00 : f32
    %25 = vector.broadcast %cst_7 : f32 to vector<1x256xf32>
    %26 = arith.cmpf olt, %24, %25 : vector<1x256xf32>
    %cst_8 = arith.constant 1.600000e+01 : f32
    %27 = vector.broadcast %cst_8 : f32 to vector<1x256xf32>
    %28 = arith.cmpf oge, %24, %27 : vector<1x256xf32>
    %cst_9 = arith.constant 1.000000e+00 : f32
    %29 = vector.broadcast %cst_9 : f32 to vector<1x256xf32>
    %30 = arith.subf %21, %29 : vector<1x256xf32>
    %cst_10 = arith.constant 1.000000e+00 : f32
    %31 = vector.broadcast %cst_10 : f32 to vector<1x256xf32>
    %32 = arith.addf %21, %31 : vector<1x256xf32>
    %33 = arith.select %28, %32, %21 : vector<1x256xi1>, vector<1x256xf32>
    %34 = arith.select %26, %30, %33 : vector<1x256xi1>, vector<1x256xf32>
    %cst_11 = arith.constant 1.600000e+01 : f32
    %35 = vector.broadcast %cst_11 : f32 to vector<1x256xf32>
    %36 = arith.addf %24, %35 : vector<1x256xf32>
    %cst_12 = arith.constant 1.600000e+01 : f32
    %37 = vector.broadcast %cst_12 : f32 to vector<1x256xf32>
    %38 = arith.subf %24, %37 : vector<1x256xf32>
    %39 = arith.select %28, %38, %24 : vector<1x256xi1>, vector<1x256xf32>
    %40 = arith.select %26, %36, %39 : vector<1x256xi1>, vector<1x256xf32>
    %41 = vector.broadcast %9 : f32 to vector<1x256xf32>
    %42 = arith.addf %41, %34 : vector<1x256xf32>
    %43 = arith.addf %40, %4 : vector<1x256xf32>
    %44 = arith.addf %42, %5 : vector<1x256xf32>
    %45 = arith.cmpf one, %43, %43 : vector<1x256xf32>
    %cst_13 = arith.constant 0.000000e+00 : f32
    %46 = vector.broadcast %cst_13 : f32 to vector<1x256xf32>
    %47 = arith.select %45, %46, %43 : vector<1x256xi1>, vector<1x256xf32>
    %48 = arith.cmpf one, %44, %44 : vector<1x256xf32>
    %cst_14 = arith.constant 0.000000e+00 : f32
    %49 = vector.broadcast %cst_14 : f32 to vector<1x256xf32>
    %50 = arith.select %48, %49, %44 : vector<1x256xi1>, vector<1x256xf32>
    %51 = tpu.iota {dimensions = array<i32: 0>} : vector<16x256xi32>
    %52 = tpu.iota {dimensions = array<i32: 0>} : vector<16x256xi32>
    %53 = math.floor %47 : vector<1x256xf32>
    %54 = math.floor %50 : vector<1x256xf32>
    %55 = arith.subf %47, %53 : vector<1x256xf32>
    %56 = arith.subf %50, %54 : vector<1x256xf32>
    %c0_i32 = arith.constant 0 : i32
    %c15_i32 = arith.constant 15 : i32
    %57 = arith.sitofp %c0_i32 : i32 to f32
    %58 = vector.broadcast %57 : f32 to vector<1x256xf32>
    %59 = arith.maximumf %58, %53 : vector<1x256xf32>
    %60 = arith.sitofp %c15_i32 : i32 to f32
    %61 = vector.broadcast %60 : f32 to vector<1x256xf32>
    %62 = arith.minimumf %61, %59 : vector<1x256xf32>
    %63 = arith.fptosi %62 : vector<1x256xf32> to vector<1x256xi32>
    %cst_15 = arith.constant 1.000000e+00 : f32
    %64 = vector.broadcast %cst_15 : f32 to vector<1x256xf32>
    %65 = arith.addf %53, %64 : vector<1x256xf32>
    %c0_i32_16 = arith.constant 0 : i32
    %c15_i32_17 = arith.constant 15 : i32
    %66 = arith.sitofp %c0_i32_16 : i32 to f32
    %67 = vector.broadcast %66 : f32 to vector<1x256xf32>
    %68 = arith.maximumf %67, %65 : vector<1x256xf32>
    %69 = arith.sitofp %c15_i32_17 : i32 to f32
    %70 = vector.broadcast %69 : f32 to vector<1x256xf32>
    %71 = arith.minimumf %70, %68 : vector<1x256xf32>
    %72 = arith.fptosi %71 : vector<1x256xf32> to vector<1x256xi32>
    %c0_i32_18 = arith.constant 0 : i32
    %c15_i32_19 = arith.constant 15 : i32
    %73 = arith.sitofp %c0_i32_18 : i32 to f32
    %74 = vector.broadcast %73 : f32 to vector<1x256xf32>
    %75 = arith.maximumf %74, %54 : vector<1x256xf32>
    %76 = arith.sitofp %c15_i32_19 : i32 to f32
    %77 = vector.broadcast %76 : f32 to vector<1x256xf32>
    %78 = arith.minimumf %77, %75 : vector<1x256xf32>
    %79 = arith.fptosi %78 : vector<1x256xf32> to vector<1x256xi32>
    %cst_20 = arith.constant 1.000000e+00 : f32
    %80 = vector.broadcast %cst_20 : f32 to vector<1x256xf32>
    %81 = arith.addf %54, %80 : vector<1x256xf32>
    %c0_i32_21 = arith.constant 0 : i32
    %c15_i32_22 = arith.constant 15 : i32
    %82 = arith.sitofp %c0_i32_21 : i32 to f32
    %83 = vector.broadcast %82 : f32 to vector<1x256xf32>
    %84 = arith.maximumf %83, %81 : vector<1x256xf32>
    %85 = arith.sitofp %c15_i32_22 : i32 to f32
    %86 = vector.broadcast %85 : f32 to vector<1x256xf32>
    %87 = arith.minimumf %86, %84 : vector<1x256xf32>
    %88 = arith.fptosi %87 : vector<1x256xf32> to vector<1x256xi32>
    %89 = vector.broadcast %79 : vector<1x256xi32> to vector<16x256xi32>
    %90 = arith.cmpi eq, %51, %89 : vector<16x256xi32>
    %cst_23 = arith.constant 1.000000e+00 : f32
    %91 = vector.broadcast %cst_23 : f32 to vector<1x256xf32>
    %92 = arith.subf %91, %56 : vector<1x256xf32>
    %cst_24 = arith.constant 0.000000e+00 : f32
    %93 = vector.shape_cast %92 : vector<1x256xf32> to vector<1x256xf32>
    %94 = vector.broadcast %93 : vector<1x256xf32> to vector<16x256xf32>
    %95 = vector.broadcast %cst_24 : f32 to vector<16x256xf32>
    %96 = arith.select %90, %94, %95 : vector<16x256xi1>, vector<16x256xf32>
    %97 = vector.broadcast %88 : vector<1x256xi32> to vector<16x256xi32>
    %98 = arith.cmpi eq, %51, %97 : vector<16x256xi32>
    %cst_25 = arith.constant 0.000000e+00 : f32
    %99 = vector.shape_cast %56 : vector<1x256xf32> to vector<1x256xf32>
    %100 = vector.broadcast %99 : vector<1x256xf32> to vector<16x256xf32>
    %101 = vector.broadcast %cst_25 : f32 to vector<16x256xf32>
    %102 = arith.select %98, %100, %101 : vector<16x256xi1>, vector<16x256xf32>
    %103 = arith.addf %96, %102 : vector<16x256xf32>
    %104 = vector.broadcast %63 : vector<1x256xi32> to vector<16x256xi32>
    %105 = arith.cmpi eq, %52, %104 : vector<16x256xi32>
    %cst_26 = arith.constant 1.000000e+00 : f32
    %106 = vector.broadcast %cst_26 : f32 to vector<1x256xf32>
    %107 = arith.subf %106, %55 : vector<1x256xf32>
    %cst_27 = arith.constant 0.000000e+00 : f32
    %108 = vector.shape_cast %107 : vector<1x256xf32> to vector<1x256xf32>
    %109 = vector.broadcast %108 : vector<1x256xf32> to vector<16x256xf32>
    %110 = vector.broadcast %cst_27 : f32 to vector<16x256xf32>
    %111 = arith.select %105, %109, %110 : vector<16x256xi1>, vector<16x256xf32>
    %112 = vector.broadcast %72 : vector<1x256xi32> to vector<16x256xi32>
    %113 = arith.cmpi eq, %52, %112 : vector<16x256xi32>
    %cst_28 = arith.constant 0.000000e+00 : f32
    %114 = vector.shape_cast %55 : vector<1x256xf32> to vector<1x256xf32>
    %115 = vector.broadcast %114 : vector<1x256xf32> to vector<16x256xf32>
    %116 = vector.broadcast %cst_28 : f32 to vector<16x256xf32>
    %117 = arith.select %113, %115, %116 : vector<16x256xi1>, vector<16x256xf32>
    %118 = arith.addf %111, %117 : vector<16x256xf32>
    %cst_29 = arith.constant dense<0.000000e+00> : vector<64x256xf32>
    %119 = tpu.matmul %1, %118, %cst_29 {dimension_numbers = #tpu.dot_dimension_numbers<[1], [0], [0], [1], [0, 0, 1, 1], [], []>} : vector<64x16xf32>, vector<16x256xf32>, vector<64x256xf32> -> vector<64x256xf32>
    %120 = vector.shape_cast %119 : vector<64x256xf32> to vector<4x16x256xf32>
    %121 = vector.shape_cast %103 : vector<16x256xf32> to vector<1x16x256xf32>
    %122 = vector.broadcast %121 : vector<1x16x256xf32> to vector<4x16x256xf32>
    %123 = arith.mulf %120, %122 : vector<4x16x256xf32>
    %cst_30 = arith.constant dense<0.000000e+00> : vector<4x256xf32>
    %124 = vector.multi_reduction <add>, %123, %cst_30 [1] : vector<4x16x256xf32> to vector<4x256xf32>
    %c0_31 = arith.constant 0 : index
    %c0_32 = arith.constant 0 : index
    %c0_33 = arith.constant 0 : index
    %125 = vector.load %arg6[%c0_31, %c0_32, %c0_33] : memref<1x4x256xf32, #tpu.memory_space<vmem>>, vector<1x4x256xf32>
    %126 = vector.shape_cast %125 : vector<1x4x256xf32> to vector<4x256xf32>
    %127 = vector.shape_cast %124 : vector<4x256xf32> to vector<1x4x256xf32>
    tpu.vector_store %arg6[%c0_31, %c0_32, %c0_33], %127 {strides = array<i32>} : memref<1x4x256xf32, #tpu.memory_space<vmem>>, vector<1x4x256xf32>,
    return
  }
  func.func @transform_0(%arg0: i32, %arg1: i32, %arg2: i32, %arg3: memref<2xi32, #tpu.memory_space<smem>>) -> (i32, i32, i32) {
    %c0_i32 = arith.constant 0 : i32
    %c0_i32_0 = arith.constant 0 : i32
    return %arg0, %arg1, %c0_i32 : i32, i32, i32
  }
  func.func @transform_1(%arg0: i32, %arg1: i32, %arg2: i32, %arg3: memref<2xi32, #tpu.memory_space<smem>>) -> (i32, i32, i32) {
    %c0_i32 = arith.constant 0 : i32
    %c0_i32_0 = arith.constant 0 : i32
    return %arg0, %c0_i32, %arg2 : i32, i32, i32
  }
  func.func @transform_2(%arg0: i32, %arg1: i32, %arg2: i32, %arg3: memref<2xi32, #tpu.memory_space<smem>>) -> (i32, i32, i32) {
    %c0_i32 = arith.constant 0 : i32
    return %arg0, %arg1, %arg2 : i32, i32, i32
  }
}

</mosaic_0001>

<llo_original>
// kernel: tpu_custom_call.1
$region0: #{tpu_custom_call.1}
  #allocation0 [shape = 'u32[]', space=smem, size = 0x4, offset = 0x4, fixed_abs, tag = 'smem constant byte address 0x4 - core index']
  #allocation1 [shape = 'u32[72,128]{1,0:T(1,128)}', space=vmem, size = 0x9000, scoped, tag = 'internal scratch']
  #allocation2 [shape = 's32[1]{0}', space=sflag, size = 0x4, scoped, tag = 'scoped memory for tpu_custom_call.1']
  #allocation3 [shape = 'u8[512]{0}', space=smem, size = 0x200, scoped, tag = 'prefetched SMEM operand 0']
  %s0 = inlined_call_operand.vmem [shape: s32[2], index: 0, kind: input, shape index: {}]
  %s1 = inlined_call_operand.vmem [shape: f32[2,64,16], index: 1, kind: input, shape index: {}]
  %s2 = inlined_call_operand.vmem [shape: f32[2,2,256], index: 2, kind: input, shape index: {}]
  %s3 = inlined_call_operand.hbm [shape: f32[2,4,256], index: 3, kind: output, shape index: {}]
  %s4 = sld [smem:[#allocation0]]
  $region41: #{tpu_custom_call.1} parent=0
    _
  %s6 = ssub.s32 1, %s4
  %s7 = scalar_select 0, %s6, %s4
  %s9 = sshll.u32 %s0, 4
  %s10 = int_to_ptr.vmem [resolvable:$true] %s9
  %12 = dma.vmem_to_smem %s10, 16, [#allocation3], [#allocation2]
  %14 = dma.done [#allocation2], 16
  %15 = sfence
  $region1: #{tpu_custom_call.1} parent=0
    #allocation4 [shape = 'u8[8192]{0}', space=vmem, size = 0x2000, scoped, tag = 'output window, operand 0']
    #allocation5 [shape = 's32[2]{0}', space=sflag, size = 0x8, scoped, tag = 'scoped memory for tpu_custom_call.1']
    %16 = vsyncpa [#allocation5], 0
    %s17 = scalar_lea.sflag [#allocation5], 1
    %18 = vsyncpa %s17, 0
    loop: start=0, step=1, limit=4
    $region2: #{tpu_custom_call.1} parent=1 // loop_pre_header
      _
    $region3: #{tpu_custom_call.1} parent=1 // loop_header
      %s20 = sphi 0, %s24
      %p21 = scmp.ge.s32.totalorder %s20, 4
      %s27 = sphi 0, %s46
      %s28 = sphi 0, %s42
      %s29 = sphi 0, %s38
      %s30 = sphi 0, %s27
      %s31 = sphi 0, %s28
      %s32 = sphi 0, %s29
      %s33 = sphi 0, %s30
      %s34 = sphi 0, %s31
      %s35 = sphi 0, %s32
      %s51 = sphi 0, %s53
      %s54 = sphi 0, %s51
      %s55 = sphi 0, %s54
      %s71 = sphi 0, %s55
      %s79 = sphi 0, %s81
      %s82 = sphi 0, %s79
      %s83 = sphi 0, %s82
      %s99 = sphi 0, %s83
      %s109 = sphi 0, %s111
      %s112 = sphi 0, %s109
      %s113 = sphi 0, %s112
      %s129 = sphi 0, %s113
    $region4: #{tpu_custom_call.1} parent=1 // loop_header_branch
      %23 = sbr.rel (%p21) target = $region8
    $region5: #{tpu_custom_call.1} parent=1 // loop_body
      %s25 = ssub.s32 %s20, 1
      %s26 = ssub.s32 %s20, 2
      %s36 = sadd.s32 1, %s29
      %p37 = scmp.ge.s32.totalorder %s36, 1
      %s38 = scalar_select %p37, 0, %s36
      %s39 = sadd.s32 1, %s28
      %s40 = scalar_select %p37, %s39, %s28
      %p41 = scmp.ge.s32.totalorder %s40, 1
      %s42 = scalar_select %p41, 0, %s40
      %s43 = sadd.s32 1, %s27
      %s44 = scalar_select %p41, %s43, %s27
      %p45 = scmp.ge.s32.totalorder %s44, 2
      %s46 = scalar_select %p45, 0, %s44
      %s47 = ssub.s32 %s27, %s46
      %s48 = ssub.s32 %s28, %s42
      %s49 = sor.u32 %s47, %s48
      %p50 = scmp.eq.s32.totalorder %s49, 0
      %s52 = sadd.s32 %s51, 1
      %s53 = scalar_select %p50, %s51, %s52
      %p56 = pneg %p50
      %p57 = scmp.eq.s32.totalorder %s20, 1
      %p58 = por %p56, %p57
      %p59 = scmp.ne.s32.totalorder %s51, %s54
      %p60 = scmp.eq.s32.totalorder %s20, 0
      %p61 = por %p59, %p60
      %p62 = scmp.ne.s32.totalorder %s51, %s54
      %p63 = scmp.eq.s32.totalorder %s25, 1
      %p64 = por %p62, %p63
      %p65 = scmp.ne.s32.totalorder %s54, %s55
      %p66 = scmp.eq.s32.totalorder %s25, 0
      %p67 = por %p65, %p66
      %p68 = scmp.ne.s32.totalorder %s54, %s55
      %p69 = scmp.eq.s32.totalorder %s26, 1
      %p70 = por %p68, %p69
      %p72 = scmp.ne.s32.totalorder %s55, %s71
      %p73 = scmp.eq.s32.totalorder %s26, 0
      %p74 = por %p72, %p73
      %s75 = ssub.s32 %s27, %s46
      %s76 = ssub.s32 %s29, %s38
      %s77 = sor.u32 %s75, %s76
      %p78 = scmp.eq.s32.totalorder %s77, 0
      %s80 = sadd.s32 %s79, 1
      %s81 = scalar_select %p78, %s79, %s80
      %p84 = pneg %p78
      %p85 = scmp.eq.s32.totalorder %s20, 1
      %p86 = por %p84, %p85
      %p87 = scmp.ne.s32.totalorder %s79, %s82
      %p88 = scmp.eq.s32.totalorder %s20, 0
      %p89 = por %p87, %p88
      %p90 = scmp.ne.s32.totalorder %s79, %s82
      %p91 = scmp.eq.s32.totalorder %s25, 1
      %p92 = por %p90, %p91
      %p93 = scmp.ne.s32.totalorder %s82, %s83
      %p94 = scmp.eq.s32.totalorder %s25, 0
      %p95 = por %p93, %p94
      %p96 = scmp.ne.s32.totalorder %s82, %s83
      %p97 = scmp.eq.s32.totalorder %s26, 1
      %p98 = por %p96, %p97
      %p100 = scmp.ne.s32.totalorder %s83, %s99
      %p101 = scmp.eq.s32.totalorder %s26, 0
      %p102 = por %p100, %p101
      %s103 = ssub.s32 %s27, %s46
      %s104 = ssub.s32 %s28, %s42
      %s105 = sor.u32 %s103, %s104
      %s106 = ssub.s32 %s29, %s38
      %s107 = sor.u32 %s105, %s106
      %p108 = scmp.eq.s32.totalorder %s107, 0
      %s110 = sadd.s32 %s109, 1
      %s111 = scalar_select %p108, %s109, %s110
      %p114 = pneg %p108
      %p115 = scmp.eq.s32.totalorder %s20, 1
      %p116 = por %p114, %p115
      %p117 = scmp.ne.s32.totalorder %s109, %s112
      %p118 = scmp.eq.s32.totalorder %s20, 0
      %p119 = por %p117, %p118
      %p120 = scmp.ne.s32.totalorder %s109, %s112
      %p121 = scmp.eq.s32.totalorder %s25, 1
      %p122 = por %p120, %p121
      %p123 = scmp.ne.s32.totalorder %s112, %s113
      %p124 = scmp.eq.s32.totalorder %s25, 0
      %p125 = por %p123, %p124
      %p126 = scmp.ne.s32.totalorder %s112, %s113
      %p127 = scmp.eq.s32.totalorder %s26, 1
      %p128 = por %p126, %p127
      %p130 = scmp.ne.s32.totalorder %s113, %s129
      %p131 = scmp.eq.s32.totalorder %s26, 0
      %p132 = por %p130, %p131
      %p133 = scmp.le.s32.totalorder 1, %s20
      %p134 = scmp.lt.s32.totalorder %s20, 3
      %p135 = pnand %p133, %p134
      %p136 = pneg %p135
      // Predicated region
      $region9: #{tpu_custom_call.1} parent=5 // pred_check
        _
      $region10: #{tpu_custom_call.1} parent=5 // pred_check_branch
        %138 = sbr.rel (%p135) target = $region12
      $region11: #{tpu_custom_call.1} parent=5 // pred_region
        %s139 = ssub.s32 %s20, 1
      $region12: #{tpu_custom_call.1} parent=5 // pred_fallthru
        _
      %p140 = scmp.lt.s32.totalorder %s20, 2
      // Predicated region
      $region13: #{tpu_custom_call.1} parent=5 // pred_check
        %p141 = pneg %p140
      $region14: #{tpu_custom_call.1} parent=5 // pred_check_branch
        %143 = sbr.rel (%p141) target = $region16
      $region15: #{tpu_custom_call.1} parent=5 // pred_region
        // Predicated region
        $region17: #{tpu_custom_call.1} parent=15 // pred_check
          %p144 = pneg %p61
        $region18: #{tpu_custom_call.1} parent=15 // pred_check_branch
          %146 = sbr.rel (%p144) target = $region20
        $region19: #{tpu_custom_call.1} parent=15 // pred_region
          %s147 = smul.u32 8, %s28
          %p148 = scmp.lt.s32.totalorder %s27, 1
          %s149 = scalar_select %p148, %s27, 1
          %p150 = scmp.lt.s32.totalorder %s147, 7
          %s151 = scalar_select %p150, %s147, 7
          %s152 = smul.addr %s149, 8
          %s153 = sadd.s32 %s151, %s152
          %s154 = smul.addr %s153, 8
          %s155 = scalar_lea.vmem %s1, %s154
          %s156 = smul.u32 8, %s28
        $region20: #{tpu_custom_call.1} parent=15 // pred_fallthru
          _
        // Predicated region
        $region21: #{tpu_custom_call.1} parent=15 // pred_check
          %p157 = pneg %p89
        $region22: #{tpu_custom_call.1} parent=15 // pred_check_branch
          %159 = sbr.rel (%p157) target = $region24
        $region23: #{tpu_custom_call.1} parent=15 // pred_region
          %s160 = smul.u32 2, %s29
          %p161 = scmp.lt.s32.totalorder %s27, 1
          %s162 = scalar_select %p161, %s27, 1
          %p163 = scmp.lt.s32.totalorder %s160, 1
          %s164 = scalar_select %p163, %s160, 1
          %s165 = smul.addr %s162, 2
          %s166 = sadd.s32 %s164, %s165
          %s167 = smul.addr %s166, 2
          %s168 = scalar_lea.vmem %s2, %s167
          %s169 = smul.u32 2, %s29
        $region24: #{tpu_custom_call.1} parent=15 // pred_fallthru
          _
      $region16: #{tpu_custom_call.1} parent=5 // pred_fallthru
        _
      %p170 = scmp.le.s32.totalorder 1, %s20
      %p171 = scmp.lt.s32.totalorder %s20, 3
      %p172 = pnand %p170, %p171
      %p173 = pneg %p172
      // Predicated region
      $region25: #{tpu_custom_call.1} parent=5 // pred_check
        _
      $region26: #{tpu_custom_call.1} parent=5 // pred_check_branch
        %175 = sbr.rel (%p172) target = $region28
      $region27: #{tpu_custom_call.1} parent=5 // pred_region
        %s176 = ssub.s32 %s20, 1
        %s177 = smul.u32 8, %s31
        %p178 = scmp.lt.s32.totalorder %s30, 1
        %s179 = scalar_select %p178, %s30, 1
        %p180 = scmp.lt.s32.totalorder %s177, 7
        %s181 = scalar_select %p180, %s177, 7
        %s182 = smul.addr %s179, 8
        %s183 = sadd.s32 %s181, %s182
        %s184 = smul.addr %s183, 8
        %s185 = scalar_lea.vmem %s1, %s184
        %p186 = pneg %p67
        %p187 = pneg %p64
        %s188 = smul.u32 2, %s32
        %p189 = scmp.lt.s32.totalorder %s30, 1
        %s190 = scalar_select %p189, %s30, 1
        %p191 = scmp.lt.s32.totalorder %s188, 1
        %s192 = scalar_select %p191, %s188, 1
        %s193 = smul.addr %s190, 2
        %s194 = sadd.s32 %s192, %s193
        %s195 = smul.addr %s194, 2
        %s196 = scalar_lea.vmem %s2, %s195
        %p197 = pneg %p95
        %p198 = pneg %p92
        %p199 = pneg %p125
        %p200 = pneg %p122
        %s201 = sand.u32 %s112, 1
        %s202 = scalar_lea.sflag [#allocation5], %s201
        %s203 = sand.u32 %s112, 1
        %s204 = smul.addr %s203, 8
        %s205 = scalar_lea.vmem [#allocation4], %s204
        %s206 = smul.u32 8, %s31
        %p207 = scmp.lt.s32.totalorder %s30, 1
        %s208 = scalar_select %p207, %s30, 1
        %p209 = scmp.lt.s32.totalorder %s206, 7
        %s210 = scalar_select %p209, %s206, 7
        %s211 = smul.addr %s208, 8
        %s212 = sadd.s32 %s210, %s211
        %s213 = smul.addr %s212, 8
        %s214 = scalar_lea.vmem %s1, %s213
        %s215 = smul.u32 8, %s31
        %s216 = smul.u32 2, %s32
        %p217 = scmp.lt.s32.totalorder %s30, 1
        %s218 = scalar_select %p217, %s30, 1
        %p219 = scmp.lt.s32.totalorder %s216, 1
        %s220 = scalar_select %p219, %s216, 1
        %s221 = smul.addr %s218, 2
        %s222 = sadd.s32 %s220, %s221
        %s223 = smul.addr %s222, 2
        %s224 = scalar_lea.vmem %s2, %s223
        %s225 = smul.u32 2, %s32
        %s226 = smul.u32 2, %s32
        %v227 = vld [vmem:[%s214] sm:$0xff]
        %v228 = vld [vmem:[%s214 + $0x8] sm:$0xff]
        %v229 = vld [vmem:[%s214 + $0x10] sm:$0xff]
        %v230 = vld [vmem:[%s214 + $0x18] sm:$0xff]
        %v231 = vld [vmem:[%s214 + $0x20] sm:$0xff]
        %v232 = vld [vmem:[%s214 + $0x28] sm:$0xff]
        %v233 = vld [vmem:[%s214 + $0x30] sm:$0xff]
        %v234 = vld [vmem:[%s214 + $0x38] sm:$0xff]
        %v235 = vld [vmem:[%s224] sm:$0xf]
        %s236 = smul.u32 %s32, 2
        %s237 = sld [smem:[#allocation3 + %s236]]
        %s238 = scvt.s32.f32 %s237
        %s239 = sadd.s32 %s236, 1
        %s240 = sld [smem:[#allocation3 + %s239]]
        %s241 = scvt.s32.f32 %s240
        %v242 = vlaneseq
        %v243 = vand.u32 %v242, 127
        %v244 = vadd.s32 %v243, 128
        %v245 = vcvt.s32.f32 %v243
        %v246 = vcvt.s32.f32 %v244
        %v247 = vstv %s241
        %v248 = vadd.f32 %v247, %v245
        %v249 = vadd.f32 %v247, %v246
        %v250 = vrcp.pop 16.0
        %v251 = vmul.f32 16.0, %v250
        %v252 = vsub.f32 1.0, %v251
        %v253 = vmul.f32 %v250, %v252
        %v254 = vadd.f32 %v250, %v253
        %vm255 = vweird.f32 %v250
        %v256 = vsel %vm255, %v250, %v254
        %v257 = vmul.f32 %v248, %v256
        %v258 = vmul.f32 %v249, %v256
        %v259 = vfloor.f32 %v257
        %v260 = vfloor.f32 %v258
        %v261 = vmul.f32 %v259, 16.0
        %v262 = vmul.f32 %v260, 16.0
        %v263 = vsub.f32 %v248, %v261
        %v264 = vsub.f32 %v249, %v262
        %vm265 = vcmp.lt.f32.partialorder %v263, 0.0
        %vm266 = vcmp.lt.f32.partialorder %v264, 0.0
        %vm267 = vcmp.ge.f32.partialorder %v263, 16.0
        %vm268 = vcmp.ge.f32.partialorder %v264, 16.0
        %v269 = vsub.f32 %v259, 1.0
        %v270 = vsub.f32 %v260, 1.0
        %v271 = vadd.f32 %v259, 1.0
        %v272 = vadd.f32 %v260, 1.0
        %v273 = vsel %vm267, %v271, %v259
        %v274 = vsel %vm268, %v272, %v260
        %v275 = vsel %vm265, %v269, %v273
        %v276 = vsel %vm266, %v270, %v274
        %v277 = vadd.f32 %v263, 16.0
        %v278 = vadd.f32 %v264, 16.0
        %v279 = vsub.f32 %v263, 16.0
        %v280 = vsub.f32 %v264, 16.0
        %v281 = vsel %vm267, %v279, %v263
        %v282 = vsel %vm268, %v280, %v264
        %v283 = vsel %vm265, %v277, %v281
        %v284 = vsel %vm266, %v278, %v282
        %v285 = vstv %s238
        %v286 = vadd.f32 %v285, %v275
        %v287 = vadd.f32 %v285, %v276
        %v289 = vperm.slane %v235, 0
        %v290 = vperm.slane %v235, 2
        %v293 = vadd.f32 %v283, %v289
        %v294 = vadd.f32 %v284, %v290
        %v295 = vperm.slane %v235, 1
        %v296 = vperm.slane %v235, 3
        %v299 = vadd.f32 %v286, %v295
        %v300 = vadd.f32 %v287, %v296
        %vm301 = vcmp.ne.f32.partialorder %v293, %v293
        %vm302 = vcmp.ne.f32.partialorder %v294, %v294
        %v303 = vsel %vm301, 0.0, %v293
        %v304 = vsel %vm302, 0.0, %v294
        %vm305 = vcmp.ne.f32.partialorder %v299, %v299
        %vm306 = vcmp.ne.f32.partialorder %v300, %v300
        %v307 = vsel %vm305, 0.0, %v299
        %v308 = vsel %vm306, 0.0, %v300
        %v309 = vlaneseq
        %v310 = vshrl.u32 %v309, 7
        %v311 = vadd.s32 %v310, 8
        %v312 = vfloor.f32 %v303
        %v313 = vfloor.f32 %v304
        %v314 = vfloor.f32 %v307
        %v315 = vfloor.f32 %v308
        %v316 = vsub.f32 %v303, %v312
        %v317 = vsub.f32 %v304, %v313
        %v318 = vsub.f32 %v307, %v314
        %v319 = vsub.f32 %v308, %v315
        %v320 = vmax.f32 %v312, 0.0
        %v321 = vmax.f32 %v313, 0.0
        %v322 = vmin.f32 %v320, 15.0
        %v323 = vmin.f32 %v321, 15.0
        %v324 = vcvt.f32.s32.to.zero.pseudo %v322
        %v325 = vcvt.f32.s32.to.zero.pseudo %v323
        %v326 = vadd.f32 %v312, 1.0
        %v327 = vadd.f32 %v313, 1.0
        %v328 = vmax.f32 %v326, 0.0
        %v329 = vmax.f32 %v327, 0.0
        %v330 = vmin.f32 %v328, 15.0
        %v331 = vmin.f32 %v329, 15.0
        %v332 = vcvt.f32.s32.to.zero.pseudo %v330
        %v333 = vcvt.f32.s32.to.zero.pseudo %v331
        %v334 = vmax.f32 %v314, 0.0
        %v335 = vmax.f32 %v315, 0.0
        %v336 = vmin.f32 %v334, 15.0
        %v337 = vmin.f32 %v335, 15.0
        %v338 = vcvt.f32.s32.to.zero.pseudo %v336
        %v339 = vcvt.f32.s32.to.zero.pseudo %v337
        %v340 = vadd.f32 %v314, 1.0
        %v341 = vadd.f32 %v315, 1.0
        %v342 = vmax.f32 %v340, 0.0
        %v343 = vmax.f32 %v341, 0.0
        %v344 = vmin.f32 %v342, 15.0
        %v345 = vmin.f32 %v343, 15.0
        %v346 = vcvt.f32.s32.to.zero.pseudo %v344
        %v347 = vcvt.f32.s32.to.zero.pseudo %v345
        %v348 = vperm.slane %v338, 0
        %v349 = vperm.slane %v339, 0
        %vm350 = vcmp.eq.s32.totalorder %v310, %v348
        %vm351 = vcmp.eq.s32.totalorder %v310, %v349
        %vm352 = vcmp.eq.s32.totalorder %v311, %v348
        %vm353 = vcmp.eq.s32.totalorder %v311, %v349
        %v354 = vsub.f32 1.0, %v318
        %v355 = vsub.f32 1.0, %v319
        %v356 = vperm.slane %v354, 0
        %v357 = vperm.slane %v355, 0
        %v358 = vsel %vm350, %v356, 0.0
        %v359 = vsel %vm351, %v357, 0.0
        %v360 = vsel %vm352, %v356, 0.0
        %v361 = vsel %vm353, %v357, 0.0
        %v362 = vperm.slane %v346, 0
        %v363 = vperm.slane %v347, 0
        %vm364 = vcmp.eq.s32.totalorder %v310, %v362
        %vm365 = vcmp.eq.s32.totalorder %v310, %v363
        %vm366 = vcmp.eq.s32.totalorder %v311, %v362
        %vm367 = vcmp.eq.s32.totalorder %v311, %v363
        %v368 = vperm.slane %v318, 0
        %v369 = vperm.slane %v319, 0
        %v370 = vsel %vm364, %v368, 0.0
        %v371 = vsel %vm365, %v369, 0.0
        %v372 = vsel %vm366, %v368, 0.0
        %v373 = vsel %vm367, %v369, 0.0
        %v374 = vadd.f32 %v358, %v370
        %v375 = vadd.f32 %v359, %v371
        %v376 = vadd.f32 %v360, %v372
        %v377 = vadd.f32 %v361, %v373
        %v378 = vperm.slane %v324, 0
        %v379 = vperm.slane %v325, 0
        %vm380 = vcmp.eq.s32.totalorder %v310, %v378
        %vm381 = vcmp.eq.s32.totalorder %v310, %v379
        %vm382 = vcmp.eq.s32.totalorder %v311, %v378
        %vm383 = vcmp.eq.s32.totalorder %v311, %v379
        %v384 = vsub.f32 1.0, %v316
        %v385 = vsub.f32 1.0, %v317
        %v386 = vperm.slane %v384, 0
        %v387 = vperm.slane %v385, 0
        %v388 = vsel %vm380, %v386, 0.0
        %v389 = vsel %vm381, %v387, 0.0
        %v390 = vsel %vm382, %v386, 0.0
        %v391 = vsel %vm383, %v387, 0.0
        %v392 = vperm.slane %v332, 0
        %v393 = vperm.slane %v333, 0
        %vm394 = vcmp.eq.s32.totalorder %v310, %v392
        %vm395 = vcmp.eq.s32.totalorder %v310, %v393
        %vm396 = vcmp.eq.s32.totalorder %v311, %v392
        %vm397 = vcmp.eq.s32.totalorder %v311, %v393
        %v398 = vperm.slane %v316, 0
        %v399 = vperm.slane %v317, 0
        %v400 = vsel %vm394, %v398, 0.0
        %v401 = vsel %vm395, %v399, 0.0
        %v402 = vsel %vm396, %v398, 0.0
        %v403 = vsel %vm397, %v399, 0.0
        %v404 = vadd.f32 %v388, %v400
        %v405 = vadd.f32 %v389, %v401
        %v406 = vadd.f32 %v390, %v402
        %v407 = vadd.f32 %v391, %v403
        %vm408 = vcmask 130048
        %v410 = vsel %vm408, %v227, 0
        %v413 = vsel %vm408, %v228, 0
        %v416 = vsel %vm408, %v229, 0
        %v419 = vsel %vm408, %v230, 0
        %v422 = vsel %vm408, %v231, 0
        %v425 = vsel %vm408, %v232, 0
        %v428 = vsel %vm408, %v233, 0
        %v431 = vsel %vm408, %v234, 0
        %433 = vmatpush.msra.mxu0 0.0
        %434 = vmatpush.msra.mxu0 0.0
        %435 = vmatpush.msra.mxu0 0.0
        %436 = vmatpush.msra.mxu0 0.0
        %437 = vmatpush.msra.mxu0 0.0
        %438 = vmatpush.msra.mxu0 0.0
        %439 = vmatpush.msra.mxu0 0.0
        %440 = vmatpush.msra.mxu0 0.0
        %441 = vmatpush.msra.mxu0 0.0
        %442 = vmatpush.msra.mxu0 0.0
        %443 = vmatpush.msra.mxu0 0.0
        %444 = vmatpush.msra.mxu0 0.0
        %445 = vmatpush.msra.mxu0 0.0
        %446 = vmatpush.msra.mxu0 0.0
        %447 = vmatpush.msra.mxu0 %v406
        %448 = vmatpush.msra.mxu0 %v404
        %449 = vmatmul.f32.gmra.mxu0 %v410
        %v450 = vpop.f32.mrf.mxu0
        %v451 = vadd.f32 0.0, %v450
        %452 = vmatmul.f32.gmra.mxu0 %v413
        %v453 = vpop.f32.mrf.mxu0
        %v454 = vadd.f32 0.0, %v453
        %455 = vmatmul.f32.gmra.mxu0 %v416
        %v456 = vpop.f32.mrf.mxu0
        %v457 = vadd.f32 0.0, %v456
        %458 = vmatmul.f32.gmra.mxu0 %v419
        %v459 = vpop.f32.mrf.mxu0
        %v460 = vadd.f32 0.0, %v459
        %461 = vmatmul.f32.gmra.mxu0 %v422
        %v462 = vpop.f32.mrf.mxu0
        %v463 = vadd.f32 0.0, %v462
        %464 = vmatmul.f32.gmra.mxu0 %v425
        %v465 = vpop.f32.mrf.mxu0
        %v466 = vadd.f32 0.0, %v465
        %467 = vmatmul.f32.gmra.mxu0 %v428
        %v468 = vpop.f32.mrf.mxu0
        %v469 = vadd.f32 0.0, %v468
        %470 = vmatmul.f32.gmra.mxu0 %v431
        %v471 = vpop.f32.mrf.mxu0
        %v472 = vadd.f32 0.0, %v471
        %473 = vdwg.mxu0
        %474 = vmatpush.msra.mxu0 0.0
        %475 = vmatpush.msra.mxu0 0.0
        %476 = vmatpush.msra.mxu0 0.0
        %477 = vmatpush.msra.mxu0 0.0
        %478 = vmatpush.msra.mxu0 0.0
        %479 = vmatpush.msra.mxu0 0.0
        %480 = vmatpush.msra.mxu0 0.0
        %481 = vmatpush.msra.mxu0 0.0
        %482 = vmatpush.msra.mxu0 0.0
        %483 = vmatpush.msra.mxu0 0.0
        %484 = vmatpush.msra.mxu0 0.0
        %485 = vmatpush.msra.mxu0 0.0
        %486 = vmatpush.msra.mxu0 0.0
        %487 = vmatpush.msra.mxu0 0.0
        %488 = vmatpush.msra.mxu0 %v407
        %489 = vmatpush.msra.mxu0 %v405
        %490 = vmatmul.f32.gmra.mxu0 %v410
        %v491 = vpop.f32.mrf.mxu0
        %v492 = vadd.f32 0.0, %v491
        %493 = vmatmul.f32.gmra.mxu0 %v413
        %v494 = vpop.f32.mrf.mxu0
        %v495 = vadd.f32 0.0, %v494
        %496 = vmatmul.f32.gmra.mxu0 %v416
        %v497 = vpop.f32.mrf.mxu0
        %v498 = vadd.f32 0.0, %v497
        %499 = vmatmul.f32.gmra.mxu0 %v419
        %v500 = vpop.f32.mrf.mxu0
        %v501 = vadd.f32 0.0, %v500
        %502 = vmatmul.f32.gmra.mxu0 %v422
        %v503 = vpop.f32.mrf.mxu0
        %v504 = vadd.f32 0.0, %v503
        %505 = vmatmul.f32.gmra.mxu0 %v425
        %v506 = vpop.f32.mrf.mxu0
        %v507 = vadd.f32 0.0, %v506
        %508 = vmatmul.f32.gmra.mxu0 %v428
        %v509 = vpop.f32.mrf.mxu0
        %v510 = vadd.f32 0.0, %v509
        %511 = vmatmul.f32.gmra.mxu0 %v431
        %v512 = vpop.f32.mrf.mxu0
        %v513 = vadd.f32 0.0, %v512
        %514 = vdwg.mxu0
        %v515 = vmul.f32 %v451, %v374
        %v516 = vmul.f32 %v492, %v375
        %v517 = vmul.f32 %v454, %v376
        %v518 = vmul.f32 %v495, %v377
        %v519 = vmul.f32 %v457, %v374
        %v520 = vmul.f32 %v498, %v375
        %v521 = vmul.f32 %v460, %v376
        %v522 = vmul.f32 %v501, %v377
        %v523 = vmul.f32 %v463, %v374
        %v524 = vmul.f32 %v504, %v375
        %v525 = vmul.f32 %v466, %v376
        %v526 = vmul.f32 %v507, %v377
        %v527 = vmul.f32 %v469, %v374
        %v528 = vmul.f32 %v510, %v375
        %v529 = vmul.f32 %v472, %v376
        %v530 = vmul.f32 %v513, %v377
        %v531 = vadd.f32 %v515, %v517
        %v532 = vrot.slane %v531, 4
        %v533 = vadd.f32 %v531, %v532
        %v534 = vrot.slane %v533, 2
        %v535 = vadd.f32 %v533, %v534
        %v536 = vrot.slane %v535, 1
        %v537 = vadd.f32 %v535, %v536
        %v538 = vadd.f32 %v516, %v518
        %v539 = vrot.slane %v538, 4
        %v540 = vadd.f32 %v538, %v539
        %v541 = vrot.slane %v540, 2
        %v542 = vadd.f32 %v540, %v541
        %v543 = vrot.slane %v542, 1
        %v544 = vadd.f32 %v542, %v543
        %v545 = vadd.f32 %v519, %v521
        %v546 = vrot.slane %v545, 4
        %v547 = vadd.f32 %v545, %v546
        %v548 = vrot.slane %v547, 2
        %v549 = vadd.f32 %v547, %v548
        %v550 = vrot.slane %v549, 1
        %v551 = vadd.f32 %v549, %v550
        %v552 = vadd.f32 %v520, %v522
        %v553 = vrot.slane %v552, 4
        %v554 = vadd.f32 %v552, %v553
        %v555 = vrot.slane %v554, 2
        %v556 = vadd.f32 %v554, %v555
        %v557 = vrot.slane %v556, 1
        %v558 = vadd.f32 %v556, %v557
        %v559 = vadd.f32 %v523, %v525
        %v560 = vrot.slane %v559, 4
        %v561 = vadd.f32 %v559, %v560
        %v562 = vrot.slane %v561, 2
        %v563 = vadd.f32 %v561, %v562
        %v564 = vrot.slane %v563, 1
        %v565 = vadd.f32 %v563, %v564
        %v566 = vadd.f32 %v524, %v526
        %v567 = vrot.slane %v566, 4
        %v568 = vadd.f32 %v566, %v567
        %v569 = vrot.slane %v568, 2
        %v570 = vadd.f32 %v568, %v569
        %v571 = vrot.slane %v570, 1
        %v572 = vadd.f32 %v570, %v571
        %v573 = vadd.f32 %v527, %v529
        %v574 = vrot.slane %v573, 4
        %v575 = vadd.f32 %v573, %v574
        %v576 = vrot.slane %v575, 2
        %v577 = vadd.f32 %v575, %v576
        %v578 = vrot.slane %v577, 1
        %v579 = vadd.f32 %v577, %v578
        %v580 = vadd.f32 %v528, %v530
        %v581 = vrot.slane %v580, 4
        %v582 = vadd.f32 %v580, %v581
        %v583 = vrot.slane %v582, 2
        %v584 = vadd.f32 %v582, %v583
        %v585 = vrot.slane %v584, 1
        %v586 = vadd.f32 %v584, %v585
        %v595 = vrot.slane %v544, 4
        %v596 = vrot.slane %v558, 4
        %v597 = vrot.slane %v572, 4
        %v598 = vrot.slane %v586, 4
        %vm599 = vcmask 1043456
        %v600 = vsel %vm599, %v537, %v595
        %v601 = vsel %vm599, %v551, %v596
        %v602 = vsel %vm599, %v565, %v597
        %v603 = vsel %vm599, %v579, %v598
        %v604 = vrot.slane %v601, 7
        %vm605 = vcmask 1041409
        %v606 = vsel %vm605, %v604, %v600
        %vm607 = vcmask 1045509
        %v608 = vsel %vm607, %v604, %v606
        %v609 = vrot.slane %v602, 6
        %vm610 = vcmask 1042434
        %v611 = vsel %vm610, %v609, %v608
        %vm612 = vcmask 1046534
        %v613 = vsel %vm612, %v609, %v611
        %v614 = vrot.slane %v603, 5
        %vm615 = vcmask 1043459
        %v616 = vsel %vm615, %v614, %v613
        %vm617 = vcmask 1047559
        %v618 = vsel %vm617, %v614, %v616
        %620 = vst [vmem:[%s205] sm:$0xff] %v618
        %s621 = sand.u32 %s112, 1
        %s622 = scalar_lea.sflag [#allocation5], %s621
        %s623 = sand.u32 %s112, 1
        %s624 = smul.addr %s623, 8
        %s625 = scalar_lea.vmem [#allocation4], %s624
        // Predicated region
        $region29: #{tpu_custom_call.1} parent=27 // pred_check
          %p626 = pneg %p122
        $region30: #{tpu_custom_call.1} parent=27 // pred_check_branch
          %628 = sbr.rel (%p626) target = $region32
        $region31: #{tpu_custom_call.1} parent=27 // pred_region
          %s629 = smul.u32 2, %s32
          %631 = vsyncadd %s622, 0
          %s632 = smul.addr %s31, 2
          %s633 = sadd.s32 %s629, %s632
          %s634 = smul.addr %s30, 2
          %s635 = sadd.s32 %s633, %s634
          %s636 = smul.addr %s635, 4
          %s637 = scalar_lea.hbm %s3, %s636
          %s639 = sshll.u32 %s625, 4
          %s640 = int_to_ptr.vmem [resolvable:$true] %s639
          %s641 = sshll.u32 %s637, 4
          %s642 = int_to_ptr.hbm [resolvable:$true] %s641
          %644 = dma.vmem_to_hbm [thread:$0]  %s640, 128, %s642, %s622
        $region32: #{tpu_custom_call.1} parent=27 // pred_fallthru
          _
      $region28: #{tpu_custom_call.1} parent=5 // pred_fallthru
        _
      %p645 = scmp.le.s32.totalorder 2, %s20
      // Predicated region
      $region33: #{tpu_custom_call.1} parent=5 // pred_check
        %p646 = pneg %p645
      $region34: #{tpu_custom_call.1} parent=5 // pred_check_branch
        %648 = sbr.rel (%p646) target = $region36
      $region35: #{tpu_custom_call.1} parent=5 // pred_region
        %s649 = ssub.s32 %s20, 2
        // Predicated region
        $region37: #{tpu_custom_call.1} parent=35 // pred_check
          %p650 = pneg %p128
        $region38: #{tpu_custom_call.1} parent=35 // pred_check_branch
          %652 = sbr.rel (%p650) target = $region40
        $region39: #{tpu_custom_call.1} parent=35 // pred_region
          %s653 = sand.u32 %s113, 1
          %s654 = scalar_lea.sflag [#allocation5], %s653
          %s655 = sand.u32 %s113, 1
          %s656 = smul.addr %s655, 8
          %s657 = scalar_lea.vmem [#allocation4], %s656
          %659 = dma.done %s654, 128
        $region40: #{tpu_custom_call.1} parent=35 // pred_fallthru
          _
      $region36: #{tpu_custom_call.1} parent=5 // pred_fallthru
        _
    $region6: #{tpu_custom_call.1} parent=1 // loop_footer
      %s24 = sadd.s32 1, %s20
    $region7: #{tpu_custom_call.1} parent=1 // loop_footer_branch
      %19 = sbr.rel target = $region3
    $region8: #{tpu_custom_call.1} parent=1 // loop_exit
      _
    %660 = vsyncpa [#allocation5], 1
    %s661 = scalar_lea.sflag [#allocation5], 1
    %662 = vsyncpa %s661, 1

</llo_original>
